<compile_context>
chip_gen: v6e
topology: v6e:2x2x1
jax: 0.10.0
libtpu: 0.0.40
codegen_flags: <defaults>
</compile_context>

<pallas_src>
import functools

import jax
import jax.numpy as jnp
from jax.experimental import pallas as pl
from jax.experimental.pallas import tpu as pltpu


def _round_up(n, m):
    return ((n + m - 1) // m) * m


def _lane_pack(output_dim):
    # Pack this many logical rows per physical row so the kernel's last dims
    # are 128-lane dense.  Falls back to 1 (plain layout, still correct) if
    # output_dim does not divide 128.
    if 0 < output_dim < 128 and 128 % output_dim == 0:
        return 128 // output_dim
    return 1


def degree_decoder_kernel(x_ref, w1_ref, b1_ref, w2_ref, b2_ref, o_ref):
    # fc1 (lane-packed): [tile_p, pack*D] @ [pack*D, pack*H] + [1, pack*H]
    # bf16 MXU inputs, f32 accumulation (kron zeros are exact in bf16).
    h = jnp.dot(x_ref[...].astype(jnp.bfloat16), w1_ref[...],
                preferred_element_type=jnp.float32)
    # dropout (p=0.5) is identity at inference time.
    # TODO(synk): training-mode dropout (pltpu.prng_random_bits mask) not emitted.
    h = jnp.maximum(h + b1_ref[...], 0.0)                     # ReLU (VPU)
    # fc2 (lane-packed): [tile_p, pack*H] @ [pack*H, pack*O] + [1, pack*O]
    o = jnp.dot(h.astype(jnp.bfloat16), w2_ref[...],
                preferred_element_type=jnp.float32)
    o = jax.nn.sigmoid(o + b2_ref[...])                       # exp/recip -> EUP slot
    o_ref[...] = o.astype(o_ref.dtype)                        # lane-dense unmasked store


def pack_degree_decoder_params(w1, b1, w2, b2, pack):
    """One-time layout glue: block-diagonal bf16 weights + tiled f32 biases."""
    H, D = w1.shape
    O = w2.shape[0]
    eye = jnp.eye(pack, dtype=jnp.float32)
    w1p = jnp.kron(eye, w1.T.astype(jnp.float32)).astype(jnp.bfloat16)  # [pack*D, pack*H]
    w2p = jnp.kron(eye, w2.T.astype(jnp.float32)).astype(jnp.bfloat16)  # [pack*H, pack*O]
    b1p = jnp.tile(b1.astype(jnp.float32), pack).reshape(1, pack * H)   # f32 biases
    b2p = jnp.tile(b2.astype(jnp.float32), pack).reshape(1, pack * O)
    return w1p, b1p, w2p, b2p


def _forward_packed(x, w1p, b1p, w2p, b2p, *, D, H, O, pack, tile_rows, out_dtype):
    N = x.shape[0]
    out_dtype = x.dtype if out_dtype is None else out_dtype

    # Pad only to the packed-reshape granularity (8*pack rows), not to a full
    # tile: padding to a tile multiple would cost an extra HBM pass over x.
    row_mult = 8 * pack
    n_pad = _round_up(max(N, 1), row_mult)
    if n_pad != N:
        x = jnp.pad(x, ((0, n_pad - N), (0, 0)))

    xp = x.reshape(n_pad // pack, pack * D)          # contiguous (free) reshape
    rows_p = n_pad // pack                           # physical rows, multiple of 8
    pD, pH, pO = pack * D, pack * H, pack * O

    # Physical row tile: big (amortize per-grid-step overhead), capped so the
    # grid stays >= 2 when there is enough work (v7x megacore has 2 TCs).
    tile_p = max(8, _round_up(tile_rows // pack, 8))
    if rows_p > 8:
        tile_p = min(tile_p, _round_up(pl.cdiv(rows_p, 2), 8))
    tile_p = min(tile_p, rows_p)
    grid = pl.cdiv(rows_p, tile_p)                   # ragged last block handled by Pallas

    cost = pl.CostEstimate(
        flops=2 * rows_p * (pD * pH + pH * pO),
        transcendentals=rows_p * pO,
        bytes_accessed=(xp.size * xp.dtype.itemsize
                        + rows_p * pO * jnp.dtype(out_dtype).itemsize
                        + w1p.size * 2 + w2p.size * 2 + (pH + pO) * 4),
    )

    # Weights/biases: constant index map -> VMEM-resident, single-buffered.
    resident = dict(pipeline_mode=pl.Buffered(1))

    out_p = pl.pallas_call(
        degree_decoder_kernel,
        out_shape=jax.ShapeDtypeStruct((rows_p, pO), out_dtype),
        grid_spec=pltpu.PrefetchScalarGridSpec(
            num_scalar_prefetch=0,
            grid=(grid,),
            in_specs=[
                pl.BlockSpec((tile_p, pD), lambda i: (i, 0)),
                pl.BlockSpec((pD, pH), lambda i: (0, 0), **resident),
                pl.BlockSpec((1, pH), lambda i: (0, 0), **resident),
                pl.BlockSpec((pH, pO), lambda i: (0, 0), **resident),
                pl.BlockSpec((1, pO), lambda i: (0, 0), **resident),
            ],
            out_specs=pl.BlockSpec((tile_p, pO), lambda i: (i, 0)),
        ),
        compiler_params=pltpu.CompilerParams(
            dimension_semantics=("parallel",),
        ),
        cost_estimate=cost,
    )(xp, w1p, b1p, w2p, b2p)

    # Undo lane-packing (contiguous reshape) and drop padded rows.
    return out_p.reshape(n_pad, O)[:N]


def make_degree_decoder(w1, b1, w2, b2, *, tile_rows=16384, out_dtype=None):
    """Precompute packed parameters once; return a jitted callable x -> y.

    w1: [H, D]; b1: [H]; w2: [O, H]; b2: [O]  (PyTorch nn.Linear layout).
    """
    H, D = w1.shape
    O = w2.shape[0]
    pack = _lane_pack(O)
    w1p, b1p, w2p, b2p = pack_degree_decoder_params(w1, b1, w2, b2, pack)
    fwd = functools.partial(_forward_packed, w1p=w1p, b1p=b1p, w2p=w2p, b2p=b2p,
                            D=D, H=H, O=O, pack=pack,
                            tile_rows=tile_rows, out_dtype=out_dtype)
    return jax.jit(lambda x: fwd(x))


def degree_decoder(x, w1, b1, w2, b2, *, tile_rows=16384, out_dtype=None):
    """One-shot convenience wrapper (packs weights inline; prefer
    make_degree_decoder for repeated calls with fixed parameters)."""
    return make_degree_decoder(w1, b1, w2, b2, tile_rows=tile_rows,
                               out_dtype=out_dtype)(x)


if __name__ == "__main__":
    # Small shapes consistent with the module: input_dim=32 -> hidden=16, output_dim=8
    N, INPUT_DIM, OUTPUT_DIM = 16, 32, 8
    HIDDEN = INPUT_DIM // 2

    key = jax.random.PRNGKey(0)
    kx, kw1, kb1, kw2, kb2, kx2 = jax.random.split(key, 6)

    # Deterministic parameter init (PyTorch-style uniform bounds).
    bound1 = 1.0 / (INPUT_DIM ** 0.5)
    bound2 = 1.0 / (HIDDEN ** 0.5)
    x = jax.random.normal(kx, (N, INPUT_DIM), dtype=jnp.float32)
    w1 = jax.random.uniform(kw1, (HIDDEN, INPUT_DIM), jnp.float32, -bound1, bound1)
    b1 = jax.random.uniform(kb1, (HIDDEN,), jnp.float32, -bound1, bound1)
    w2 = jax.random.uniform(kw2, (OUTPUT_DIM, HIDDEN), jnp.float32, -bound2, bound2)
    b2 = jax.random.uniform(kb2, (OUTPUT_DIM,), jnp.float32, -bound2, bound2)

    decoder = make_degree_decoder(w1, b1, w2, b2)

    def ref_fn(xx):
        return jax.nn.sigmoid(jnp.maximum(xx @ w1.T + b1, 0.0) @ w2.T + b2)

    # Basic run.
    out = jax.block_until_ready(decoder(x))
    assert out.shape == (N, OUTPUT_DIM)
    # bf16 MXU inputs -> looser tolerance than pure f32 (post-sigmoid outputs).
    assert jnp.allclose(out, ref_fn(x), atol=2e-2, rtol=2e-2)

    # Exercise the ragged (N not a multiple of 128) path and a grid of size >= 2.
    N2 = 300
    x2 = jax.random.normal(kx2, (N2, INPUT_DIM), dtype=jnp.float32)
    out2 = jax.block_until_ready(decoder(x2))
    assert out2.shape == (N2, OUTPUT_DIM)
    assert jnp.allclose(out2, ref_fn(x2), atol=2e-2, rtol=2e-2)

    print("KERNEL_OK")
</pallas_src>

<mosaic_0001>
module attributes {stable_mosaic.version = 11 : i64} {
  func.func @degree_decoder_kernel(%arg0: i32, %arg1: memref<8x512xf32, #tpu.memory_space<vmem>>, %arg2: memref<512x256xbf16, #tpu.memory_space<vmem>>, %arg3: memref<1x256xf32, #tpu.memory_space<vmem>>, %arg4: memref<256x128xbf16, #tpu.memory_space<vmem>>, %arg5: memref<1x128xf32, #tpu.memory_space<vmem>>, %arg6: memref<8x128xf32, #tpu.memory_space<vmem>>) attributes {dimension_semantics = [#tpu.dimension_semantics<parallel>], iteration_bounds = array<i64: 1>, scalar_prefetch = 0 : i64, scratch_operands = 0 : i64, tpu.core_type = #tpu.core_type<tc>, window_params = [{transform_indices = @transform_0, window_bounds = array<i64: 8, 512>}, {pipeline_mode = #tpu.pipeline_mode<synchronous>, transform_indices = @transform_1, window_bounds = array<i64: 512, 256>}, {pipeline_mode = #tpu.pipeline_mode<synchronous>, transform_indices = @transform_2, window_bounds = array<i64: 1, 256>}, {pipeline_mode = #tpu.pipeline_mode<synchronous>, transform_indices = @transform_3, window_bounds = array<i64: 256, 128>}, {pipeline_mode = #tpu.pipeline_mode<synchronous>, transform_indices = @transform_4, window_bounds = array<i64: 1, 128>}, {transform_indices = @transform_5, window_bounds = array<i64: 8, 128>}]} {
    %c0 = arith.constant 0 : index
    %c0_0 = arith.constant 0 : index
    %0 = vector.load %arg1[%c0, %c0_0] : memref<8x512xf32, #tpu.memory_space<vmem>>, vector<8x512xf32>
    %1 = arith.truncf %0 : vector<8x512xf32> to vector<8x512xbf16>
    %c0_1 = arith.constant 0 : index
    %c0_2 = arith.constant 0 : index
    %2 = vector.load %arg2[%c0_1, %c0_2] : memref<512x256xbf16, #tpu.memory_space<vmem>>, vector<512x256xbf16>
    %cst = arith.constant dense<0.000000e+00> : vector<8x256xf32>
    %3 = tpu.matmul %1, %2, %cst {dimension_numbers = #tpu.dot_dimension_numbers<[1], [0], [0], [1], [0, 0, 1, 1], [], []>} : vector<8x512xbf16>, vector<512x256xbf16>, vector<8x256xf32> -> vector<8x256xf32>
    %c0_3 = arith.constant 0 : index
    %c0_4 = arith.constant 0 : index
    %4 = vector.load %arg3[%c0_3, %c0_4] : memref<1x256xf32, #tpu.memory_space<vmem>>, vector<1x256xf32>
    %5 = vector.broadcast %4 : vector<1x256xf32> to vector<8x256xf32>
    %6 = arith.addf %3, %5 : vector<8x256xf32>
    %cst_5 = arith.constant 0.000000e+00 : f32
    %7 = vector.broadcast %cst_5 : f32 to vector<8x256xf32>
    %8 = arith.maximumf %6, %7 : vector<8x256xf32>
    %9 = arith.truncf %8 : vector<8x256xf32> to vector<8x256xbf16>
    %c0_6 = arith.constant 0 : index
    %c0_7 = arith.constant 0 : index
    %10 = vector.load %arg4[%c0_6, %c0_7] : memref<256x128xbf16, #tpu.memory_space<vmem>>, vector<256x128xbf16>
    %cst_8 = arith.constant dense<0.000000e+00> : vector<8x128xf32>
    %11 = tpu.matmul %9, %10, %cst_8 {dimension_numbers = #tpu.dot_dimension_numbers<[1], [0], [0], [1], [0, 0, 1, 1], [], []>} : vector<8x256xbf16>, vector<256x128xbf16>, vector<8x128xf32> -> vector<8x128xf32>
    %c0_9 = arith.constant 0 : index
    %c0_10 = arith.constant 0 : index
    %12 = vector.load %arg5[%c0_9, %c0_10] : memref<1x128xf32, #tpu.memory_space<vmem>>, vector<1x128xf32>
    %13 = vector.broadcast %12 : vector<1x128xf32> to vector<8x128xf32>
    %14 = arith.addf %11, %13 : vector<8x128xf32>
    %15 = arith.negf %14 : vector<8x128xf32>
    %16 = math.exp %15 : vector<8x128xf32>
    %cst_11 = arith.constant 1.000000e+00 : f32
    %17 = vector.broadcast %cst_11 : f32 to vector<8x128xf32>
    %18 = arith.addf %17, %16 : vector<8x128xf32>
    %19 = arith.divf %17, %18 : vector<8x128xf32>
    %c0_12 = arith.constant 0 : index
    %c0_13 = arith.constant 0 : index
    %20 = vector.load %arg6[%c0_12, %c0_13] : memref<8x128xf32, #tpu.memory_space<vmem>>, vector<8x128xf32>
    tpu.vector_store %arg6[%c0_12, %c0_13], %19 {strides = array<i32>} : memref<8x128xf32, #tpu.memory_space<vmem>>, vector<8x128xf32>,
    return
  }
  func.func @transform_0(%arg0: i32) -> (i32, i32) {
    %c0_i32 = arith.constant 0 : i32
    %c0_i32_0 = arith.constant 0 : i32
    return %arg0, %c0_i32 : i32, i32
  }
  func.func @transform_1(%arg0: i32) -> (i32, i32) {
    %c0_i32 = arith.constant 0 : i32
    %c0_i32_0 = arith.constant 0 : i32
    %c0_i32_1 = arith.constant 0 : i32
    return %c0_i32, %c0_i32_0 : i32, i32
  }
  func.func @transform_2(%arg0: i32) -> (i32, i32) {
    %c0_i32 = arith.constant 0 : i32
    %c0_i32_0 = arith.constant 0 : i32
    %c0_i32_1 = arith.constant 0 : i32
    return %c0_i32, %c0_i32_0 : i32, i32
  }
  func.func @transform_3(%arg0: i32) -> (i32, i32) {
    %c0_i32 = arith.constant 0 : i32
    %c0_i32_0 = arith.constant 0 : i32
    %c0_i32_1 = arith.constant 0 : i32
    return %c0_i32, %c0_i32_0 : i32, i32
  }
  func.func @transform_4(%arg0: i32) -> (i32, i32) {
    %c0_i32 = arith.constant 0 : i32
    %c0_i32_0 = arith.constant 0 : i32
    %c0_i32_1 = arith.constant 0 : i32
    return %c0_i32, %c0_i32_0 : i32, i32
  }
  func.func @transform_5(%arg0: i32) -> (i32, i32) {
    %c0_i32 = arith.constant 0 : i32
    %c0_i32_0 = arith.constant 0 : i32
    return %arg0, %c0_i32 : i32, i32
  }
}

</mosaic_0001>

<llo_original>
// kernel: _lambda_.1
$region0: #{_lambda_.1}
  #allocation0 [shape = 'u32[]', space=smem, size = 0x4, offset = 0x4, fixed_abs, tag = 'smem constant byte address 0x4 - core index']
  #allocation1 [shape = 'u32[144,128]{1,0:T(1,128)}', space=vmem, size = 0x12000, scoped, tag = 'internal scratch']
  %s0 = inlined_call_operand.vmem [shape: f32[8,512], index: 0, kind: input, shape index: {}]
  %s1 = inlined_call_operand.hbm [shape: bf16[512,256], index: 1, kind: input, shape index: {}]
  %s2 = inlined_call_operand.vmem [shape: f32[1,256], index: 2, kind: input, shape index: {}]
  %s3 = inlined_call_operand.vmem [shape: bf16[256,128], index: 3, kind: input, shape index: {}]
  %s4 = inlined_call_operand.vmem [shape: f32[1,128], index: 4, kind: input, shape index: {}]
  %s5 = inlined_call_operand.vmem [shape: f32[8,128], index: 5, kind: output, shape index: {}]
  %s6 = sld [smem:[#allocation0]]
  $region34: #{_lambda_.1} parent=0
    _
  %s8 = ssub.s32 1, %s6
  %s9 = scalar_select 0, %s8, %s6
  $region1: #{_lambda_.1} parent=0
    #allocation2 [shape = 'u8[262144]{0}', space=vmem, size = 0x40000, scoped, tag = 'input window, operand 1, single buffered']
    #allocation3 [shape = 's32[1]{0}', space=sflag, size = 0x4, scoped, tag = 'scoped memory for _lambda_.1']
    %10 = vsyncpa [#allocation3], 0
    // Predicated region
    $region2: #{_lambda_.1} parent=1 // pred_check
      _
    $region3: #{_lambda_.1} parent=1 // pred_check_branch
      %12 = sbr.rel (0) target = $region5
    $region4: #{_lambda_.1} parent=1 // pred_region
      _
    $region5: #{_lambda_.1} parent=1 // pred_fallthru
      _
    // Predicated region
    $region6: #{_lambda_.1} parent=1 // pred_check
      _
    $region7: #{_lambda_.1} parent=1 // pred_check_branch
      %14 = sbr.rel (0) target = $region9
    $region8: #{_lambda_.1} parent=1 // pred_region
      %s16 = ssub.s32 8192, 8192
      %17 = vsyncadd [#allocation3], %s16
      %s18 = sshll.u32 [#allocation2], 4
      %s19 = int_to_ptr.vmem [resolvable:$true] %s18
      %24 = dma.hbm_to_vmem [thread:$0]  %s1, 8192, %s19, [#allocation3], 128, 128, 8
    $region9: #{_lambda_.1} parent=1 // pred_fallthru
      _
    // Predicated region
    $region10: #{_lambda_.1} parent=1 // pred_check
      _
    $region11: #{_lambda_.1} parent=1 // pred_check_branch
      %26 = sbr.rel (0) target = $region13
    $region12: #{_lambda_.1} parent=1 // pred_region
      _
    $region13: #{_lambda_.1} parent=1 // pred_fallthru
      _
    // Predicated region
    $region14: #{_lambda_.1} parent=1 // pred_check
      _
    $region15: #{_lambda_.1} parent=1 // pred_check_branch
      %28 = sbr.rel (0) target = $region17
    $region16: #{_lambda_.1} parent=1 // pred_region
      _
    $region17: #{_lambda_.1} parent=1 // pred_fallthru
      _
    // Predicated region
    $region18: #{_lambda_.1} parent=1 // pred_check
      _
    $region19: #{_lambda_.1} parent=1 // pred_check_branch
      %30 = sbr.rel (0) target = $region21
    $region20: #{_lambda_.1} parent=1 // pred_region
      _
    $region21: #{_lambda_.1} parent=1 // pred_fallthru
      _
    // Predicated region
    $region22: #{_lambda_.1} parent=1 // pred_check
      _
    $region23: #{_lambda_.1} parent=1 // pred_check_branch
      %32 = sbr.rel (0) target = $region25
    $region24: #{_lambda_.1} parent=1 // pred_region
      %33 = dma.done [#allocation3], 8192
    $region25: #{_lambda_.1} parent=1 // pred_fallthru
      _
    %v35 = vld [vmem:[%s0] sm:$0xff]
    %v36 = vld [vmem:[%s0 + $0x8] sm:$0xff]
    %v37 = vld [vmem:[%s0 + $0x10] sm:$0xff]
    %v38 = vld [vmem:[%s0 + $0x18] sm:$0xff]
    %v39 = vpack.c.bf16 %v35, %v35
    %v40 = vpack.c.bf16 %v36, %v36
    %v41 = vpack.c.bf16 %v37, %v37
    %v42 = vpack.c.bf16 %v38, %v38
    %v43 = vld [vmem:[#allocation2] sm:$0xff]
    %v44 = vld [vmem:[#allocation2 + $0x8] sm:$0xff]
    %v45 = vld [vmem:[#allocation2 + $0x10] sm:$0xff]
    %v46 = vld [vmem:[#allocation2 + $0x18] sm:$0xff]
    %v47 = vld [vmem:[#allocation2 + $0x20] sm:$0xff]
    %v48 = vld [vmem:[#allocation2 + $0x28] sm:$0xff]
    %v49 = vld [vmem:[#allocation2 + $0x30] sm:$0xff]
    %v50 = vld [vmem:[#allocation2 + $0x38] sm:$0xff]
    %v51 = vld [vmem:[#allocation2 + $0x40] sm:$0xff]
    %v52 = vld [vmem:[#allocation2 + $0x48] sm:$0xff]
    %v53 = vld [vmem:[#allocation2 + $0x50] sm:$0xff]
    %v54 = vld [vmem:[#allocation2 + $0x58] sm:$0xff]
    %v55 = vld [vmem:[#allocation2 + $0x60] sm:$0xff]
    %v56 = vld [vmem:[#allocation2 + $0x68] sm:$0xff]
    %v57 = vld [vmem:[#allocation2 + $0x70] sm:$0xff]
    %v58 = vld [vmem:[#allocation2 + $0x78] sm:$0xff]
    %v59 = vld [vmem:[#allocation2 + $0x80] sm:$0xff]
    %v60 = vld [vmem:[#allocation2 + $0x88] sm:$0xff]
    %v61 = vld [vmem:[#allocation2 + $0x90] sm:$0xff]
    %v62 = vld [vmem:[#allocation2 + $0x98] sm:$0xff]
    %v63 = vld [vmem:[#allocation2 + $0xa0] sm:$0xff]
    %v64 = vld [vmem:[#allocation2 + $0xa8] sm:$0xff]
    %v65 = vld [vmem:[#allocation2 + $0xb0] sm:$0xff]
    %v66 = vld [vmem:[#allocation2 + $0xb8] sm:$0xff]
    %v67 = vld [vmem:[#allocation2 + $0xc0] sm:$0xff]
    %v68 = vld [vmem:[#allocation2 + $0xc8] sm:$0xff]
    %v69 = vld [vmem:[#allocation2 + $0xd0] sm:$0xff]
    %v70 = vld [vmem:[#allocation2 + $0xd8] sm:$0xff]
    %v71 = vld [vmem:[#allocation2 + $0xe0] sm:$0xff]
    %v72 = vld [vmem:[#allocation2 + $0xe8] sm:$0xff]
    %v73 = vld [vmem:[#allocation2 + $0xf0] sm:$0xff]
    %v74 = vld [vmem:[#allocation2 + $0xf8] sm:$0xff]
    %v75 = vld [vmem:[#allocation2 + $0x100] sm:$0xff]
    %v76 = vld [vmem:[#allocation2 + $0x108] sm:$0xff]
    %v77 = vld [vmem:[#allocation2 + $0x110] sm:$0xff]
    %v78 = vld [vmem:[#allocation2 + $0x118] sm:$0xff]
    %v79 = vld [vmem:[#allocation2 + $0x120] sm:$0xff]
    %v80 = vld [vmem:[#allocation2 + $0x128] sm:$0xff]
    %v81 = vld [vmem:[#allocation2 + $0x130] sm:$0xff]
    %v82 = vld [vmem:[#allocation2 + $0x138] sm:$0xff]
    %v83 = vld [vmem:[#allocation2 + $0x140] sm:$0xff]
    %v84 = vld [vmem:[#allocation2 + $0x148] sm:$0xff]
    %v85 = vld [vmem:[#allocation2 + $0x150] sm:$0xff]
    %v86 = vld [vmem:[#allocation2 + $0x158] sm:$0xff]
    %v87 = vld [vmem:[#allocation2 + $0x160] sm:$0xff]
    %v88 = vld [vmem:[#allocation2 + $0x168] sm:$0xff]
    %v89 = vld [vmem:[#allocation2 + $0x170] sm:$0xff]
    %v90 = vld [vmem:[#allocation2 + $0x178] sm:$0xff]
    %v91 = vld [vmem:[#allocation2 + $0x180] sm:$0xff]
    %v92 = vld [vmem:[#allocation2 + $0x188] sm:$0xff]
    %v93 = vld [vmem:[#allocation2 + $0x190] sm:$0xff]
    %v94 = vld [vmem:[#allocation2 + $0x198] sm:$0xff]
    %v95 = vld [vmem:[#allocation2 + $0x1a0] sm:$0xff]
    %v96 = vld [vmem:[#allocation2 + $0x1a8] sm:$0xff]
    %v97 = vld [vmem:[#allocation2 + $0x1b0] sm:$0xff]
    %v98 = vld [vmem:[#allocation2 + $0x1b8] sm:$0xff]
    %v99 = vld [vmem:[#allocation2 + $0x1c0] sm:$0xff]
    %v100 = vld [vmem:[#allocation2 + $0x1c8] sm:$0xff]
    %v101 = vld [vmem:[#allocation2 + $0x1d0] sm:$0xff]
    %v102 = vld [vmem:[#allocation2 + $0x1d8] sm:$0xff]
    %v103 = vld [vmem:[#allocation2 + $0x1e0] sm:$0xff]
    %v104 = vld [vmem:[#allocation2 + $0x1e8] sm:$0xff]
    %v105 = vld [vmem:[#allocation2 + $0x1f0] sm:$0xff]
    %v106 = vld [vmem:[#allocation2 + $0x1f8] sm:$0xff]
    %v107 = vld [vmem:[%s2] sm:$0x3]
    %v109 = vlaneseq
    %v110 = vshrl.u32 %v109, 7
    %v111 = vsub.s32 0, %v110
    %v112 = vrot.slane %v107, %v111
    %v113 = vlaneseq
    %v114 = vshrl.u32 %v113, 7
    %v115 = vsub.s32 1, %v114
    %v116 = vrot.slane %v107, %v115
    %v183 = vunpack.c.l.b16 %v43
    %v184 = vunpack.c.h.b16 %v43
    %v185 = vunpack.c.l.b16 %v44
    %v186 = vunpack.c.h.b16 %v44
    %v187 = vunpack.c.l.b16 %v45
    %v188 = vunpack.c.h.b16 %v45
    %v189 = vunpack.c.l.b16 %v46
    %v190 = vunpack.c.h.b16 %v46
    %v191 = vunpack.c.l.b16 %v47
    %v192 = vunpack.c.h.b16 %v47
    %v193 = vunpack.c.l.b16 %v48
    %v194 = vunpack.c.h.b16 %v48
    %v195 = vunpack.c.l.b16 %v49
    %v196 = vunpack.c.h.b16 %v49
    %v197 = vunpack.c.l.b16 %v50
    %v198 = vunpack.c.h.b16 %v50
    %v199 = vunpack.c.l.b16 %v51
    %v200 = vunpack.c.h.b16 %v51
    %v201 = vunpack.c.l.b16 %v52
    %v202 = vunpack.c.h.b16 %v52
    %v203 = vunpack.c.l.b16 %v53
    %v204 = vunpack.c.h.b16 %v53
    %v205 = vunpack.c.l.b16 %v54
    %v206 = vunpack.c.h.b16 %v54
    %v207 = vunpack.c.l.b16 %v55
    %v208 = vunpack.c.h.b16 %v55
    %v209 = vunpack.c.l.b16 %v56
    %v210 = vunpack.c.h.b16 %v56
    %v211 = vunpack.c.l.b16 %v57
    %v212 = vunpack.c.h.b16 %v57
    %v213 = vunpack.c.l.b16 %v58
    %v214 = vunpack.c.h.b16 %v58
    %v215 = vunpack.c.l.b16 %v59
    %v216 = vunpack.c.h.b16 %v59
    %v217 = vunpack.c.l.b16 %v60
    %v218 = vunpack.c.h.b16 %v60
    %v219 = vunpack.c.l.b16 %v61
    %v220 = vunpack.c.h.b16 %v61
    %v221 = vunpack.c.l.b16 %v62
    %v222 = vunpack.c.h.b16 %v62
    %v223 = vunpack.c.l.b16 %v63
    %v224 = vunpack.c.h.b16 %v63
    %v225 = vunpack.c.l.b16 %v64
    %v226 = vunpack.c.h.b16 %v64
    %v227 = vunpack.c.l.b16 %v65
    %v228 = vunpack.c.h.b16 %v65
    %v229 = vunpack.c.l.b16 %v66
    %v230 = vunpack.c.h.b16 %v66
    %v231 = vunpack.c.l.b16 %v67
    %v232 = vunpack.c.h.b16 %v67
    %v233 = vunpack.c.l.b16 %v68
    %v234 = vunpack.c.h.b16 %v68
    %v235 = vunpack.c.l.b16 %v69
    %v236 = vunpack.c.h.b16 %v69
    %v237 = vunpack.c.l.b16 %v70
    %v238 = vunpack.c.h.b16 %v70
    %v239 = vunpack.c.l.b16 %v71
    %v240 = vunpack.c.h.b16 %v71
    %v241 = vunpack.c.l.b16 %v72
    %v242 = vunpack.c.h.b16 %v72
    %v243 = vunpack.c.l.b16 %v73
    %v244 = vunpack.c.h.b16 %v73
    %v245 = vunpack.c.l.b16 %v74
    %v246 = vunpack.c.h.b16 %v74
    %v247 = vunpack.c.l.b16 %v75
    %v248 = vunpack.c.h.b16 %v75
    %v249 = vunpack.c.l.b16 %v76
    %v250 = vunpack.c.h.b16 %v76
    %v251 = vunpack.c.l.b16 %v77
    %v252 = vunpack.c.h.b16 %v77
    %v253 = vunpack.c.l.b16 %v78
    %v254 = vunpack.c.h.b16 %v78
    %v255 = vunpack.c.l.b16 %v79
    %v256 = vunpack.c.h.b16 %v79
    %v257 = vunpack.c.l.b16 %v80
    %v258 = vunpack.c.h.b16 %v80
    %v259 = vunpack.c.l.b16 %v81
    %v260 = vunpack.c.h.b16 %v81
    %v261 = vunpack.c.l.b16 %v82
    %v262 = vunpack.c.h.b16 %v82
    %v263 = vunpack.c.l.b16 %v83
    %v264 = vunpack.c.h.b16 %v83
    %v265 = vunpack.c.l.b16 %v84
    %v266 = vunpack.c.h.b16 %v84
    %v267 = vunpack.c.l.b16 %v85
    %v268 = vunpack.c.h.b16 %v85
    %v269 = vunpack.c.l.b16 %v86
    %v270 = vunpack.c.h.b16 %v86
    %v271 = vunpack.c.l.b16 %v87
    %v272 = vunpack.c.h.b16 %v87
    %v273 = vunpack.c.l.b16 %v88
    %v274 = vunpack.c.h.b16 %v88
    %v275 = vunpack.c.l.b16 %v89
    %v276 = vunpack.c.h.b16 %v89
    %v277 = vunpack.c.l.b16 %v90
    %v278 = vunpack.c.h.b16 %v90
    %v279 = vunpack.c.l.b16 %v91
    %v280 = vunpack.c.h.b16 %v91
    %v281 = vunpack.c.l.b16 %v92
    %v282 = vunpack.c.h.b16 %v92
    %v283 = vunpack.c.l.b16 %v93
    %v284 = vunpack.c.h.b16 %v93
    %v285 = vunpack.c.l.b16 %v94
    %v286 = vunpack.c.h.b16 %v94
    %v287 = vunpack.c.l.b16 %v95
    %v288 = vunpack.c.h.b16 %v95
    %v289 = vunpack.c.l.b16 %v96
    %v290 = vunpack.c.h.b16 %v96
    %v291 = vunpack.c.l.b16 %v97
    %v292 = vunpack.c.h.b16 %v97
    %v293 = vunpack.c.l.b16 %v98
    %v294 = vunpack.c.h.b16 %v98
    %v295 = vunpack.c.l.b16 %v99
    %v296 = vunpack.c.h.b16 %v99
    %v297 = vunpack.c.l.b16 %v100
    %v298 = vunpack.c.h.b16 %v100
    %v299 = vunpack.c.l.b16 %v101
    %v300 = vunpack.c.h.b16 %v101
    %v301 = vunpack.c.l.b16 %v102
    %v302 = vunpack.c.h.b16 %v102
    %v303 = vunpack.c.l.b16 %v103
    %v304 = vunpack.c.h.b16 %v103
    %v305 = vunpack.c.l.b16 %v104
    %v306 = vunpack.c.h.b16 %v104
    %v307 = vunpack.c.l.b16 %v105
    %v308 = vunpack.c.h.b16 %v105
    %v309 = vunpack.c.l.b16 %v106
    %v310 = vunpack.c.h.b16 %v106
    %v311 = vpack.c.b16 %v185, %v183
    %v312 = vpack.c.b16 %v186, %v184
    %v313 = vpack.c.b16 %v189, %v187
    %v314 = vpack.c.b16 %v190, %v188
    %v315 = vpack.c.b16 %v193, %v191
    %v316 = vpack.c.b16 %v194, %v192
    %v317 = vpack.c.b16 %v197, %v195
    %v318 = vpack.c.b16 %v198, %v196
    %v319 = vpack.c.b16 %v201, %v199
    %v320 = vpack.c.b16 %v202, %v200
    %v321 = vpack.c.b16 %v205, %v203
    %v322 = vpack.c.b16 %v206, %v204
    %v323 = vpack.c.b16 %v209, %v207
    %v324 = vpack.c.b16 %v210, %v208
    %v325 = vpack.c.b16 %v213, %v211
    %v326 = vpack.c.b16 %v214, %v212
    %v327 = vpack.c.b16 %v217, %v215
    %v328 = vpack.c.b16 %v218, %v216
    %v329 = vpack.c.b16 %v221, %v219
    %v330 = vpack.c.b16 %v222, %v220
    %v331 = vpack.c.b16 %v225, %v223
    %v332 = vpack.c.b16 %v226, %v224
    %v333 = vpack.c.b16 %v229, %v227
    %v334 = vpack.c.b16 %v230, %v228
    %v335 = vpack.c.b16 %v233, %v231
    %v336 = vpack.c.b16 %v234, %v232
    %v337 = vpack.c.b16 %v237, %v235
    %v338 = vpack.c.b16 %v238, %v236
    %v339 = vpack.c.b16 %v241, %v239
    %v340 = vpack.c.b16 %v242, %v240
    %v341 = vpack.c.b16 %v245, %v243
    %v342 = vpack.c.b16 %v246, %v244
    %v343 = vpack.c.b16 %v249, %v247
    %v344 = vpack.c.b16 %v250, %v248
    %v345 = vpack.c.b16 %v253, %v251
    %v346 = vpack.c.b16 %v254, %v252
    %v347 = vpack.c.b16 %v257, %v255
    %v348 = vpack.c.b16 %v258, %v256
    %v349 = vpack.c.b16 %v261, %v259
    %v350 = vpack.c.b16 %v262, %v260
    %v351 = vpack.c.b16 %v265, %v263
    %v352 = vpack.c.b16 %v266, %v264
    %v353 = vpack.c.b16 %v269, %v267
    %v354 = vpack.c.b16 %v270, %v268
    %v355 = vpack.c.b16 %v273, %v271
    %v356 = vpack.c.b16 %v274, %v272
    %v357 = vpack.c.b16 %v277, %v275
    %v358 = vpack.c.b16 %v278, %v276
    %v359 = vpack.c.b16 %v281, %v279
    %v360 = vpack.c.b16 %v282, %v280
    %v361 = vpack.c.b16 %v285, %v283
    %v362 = vpack.c.b16 %v286, %v284
    %v363 = vpack.c.b16 %v289, %v287
    %v364 = vpack.c.b16 %v290, %v288
    %v365 = vpack.c.b16 %v293, %v291
    %v366 = vpack.c.b16 %v294, %v292
    %v367 = vpack.c.b16 %v297, %v295
    %v368 = vpack.c.b16 %v298, %v296
    %v369 = vpack.c.b16 %v301, %v299
    %v370 = vpack.c.b16 %v302, %v300
    %v371 = vpack.c.b16 %v305, %v303
    %v372 = vpack.c.b16 %v306, %v304
    %v373 = vpack.c.b16 %v309, %v307
    %v374 = vpack.c.b16 %v310, %v308
    %439 = vmatprep.subr.bf16.mxu0 %v326
    %440 = vmatpush1.bf16.msra.mxu0 %v325
    %441 = vmatprep.subr.bf16.mxu0 %v324
    %442 = vmatpush1.bf16.msra.mxu0 %v323
    %443 = vmatprep.subr.bf16.mxu0 %v322
    %444 = vmatpush1.bf16.msra.mxu0 %v321
    %445 = vmatprep.subr.bf16.mxu0 %v320
    %446 = vmatpush1.bf16.msra.mxu0 %v319
    %447 = vmatprep.subr.bf16.mxu0 %v318
    %448 = vmatpush1.bf16.msra.mxu0 %v317
    %449 = vmatprep.subr.bf16.mxu0 %v316
    %450 = vmatpush1.bf16.msra.mxu0 %v315
    %451 = vmatprep.subr.bf16.mxu0 %v314
    %452 = vmatpush1.bf16.msra.mxu0 %v313
    %453 = vmatprep.subr.bf16.mxu0 %v312
    %454 = vmatpush1.bf16.msra.mxu0 %v311
    %455 = vmatprep.subr.bf16.mxu0 %v342
    %456 = vmatpush2.bf16.msra.mxu0 %v341
    %457 = vmatprep.subr.bf16.mxu0 %v340
    %458 = vmatpush2.bf16.msra.mxu0 %v339
    %459 = vmatprep.subr.bf16.mxu0 %v338
    %460 = vmatpush2.bf16.msra.mxu0 %v337
    %461 = vmatprep.subr.bf16.mxu0 %v336
    %462 = vmatpush2.bf16.msra.mxu0 %v335
    %463 = vmatprep.subr.bf16.mxu0 %v334
    %464 = vmatpush2.bf16.msra.mxu0 %v333
    %465 = vmatprep.subr.bf16.mxu0 %v332
    %466 = vmatpush2.bf16.msra.mxu0 %v331
    %467 = vmatprep.subr.bf16.mxu0 %v330
    %468 = vmatpush2.bf16.msra.mxu0 %v329
    %469 = vmatprep.subr.bf16.mxu0 %v328
    %470 = vmatpush2.bf16.msra.mxu0 %v327
    %471 = vmatprep.mubr.bf16.mxu0 %v40
    %472 = vmatmul.mubr.bf16.gmra.mxu0 %v39
    %v473 = vpop.f32.mrf.mxu0
    %v474 = vadd.f32 %v112, %v473
    %v475 = vpop.f32.mrf.mxu0
    %v476 = vadd.f32 %v116, %v475
    %v477 = vpop.f32.mrf.mxu0
    %v478 = vpop.f32.mrf.mxu0
    %479 = vdwg.mxu0
    %480 = vmatprep.subr.bf16.mxu0 %v358
    %481 = vmatpush1.bf16.msra.mxu0 %v357
    %482 = vmatprep.subr.bf16.mxu0 %v356
    %483 = vmatpush1.bf16.msra.mxu0 %v355
    %484 = vmatprep.subr.bf16.mxu0 %v354
    %485 = vmatpush1.bf16.msra.mxu0 %v353
    %486 = vmatprep.subr.bf16.mxu0 %v352
    %487 = vmatpush1.bf16.msra.mxu0 %v351
    %488 = vmatprep.subr.bf16.mxu0 %v350
    %489 = vmatpush1.bf16.msra.mxu0 %v349
    %490 = vmatprep.subr.bf16.mxu0 %v348
    %491 = vmatpush1.bf16.msra.mxu0 %v347
    %492 = vmatprep.subr.bf16.mxu0 %v346
    %493 = vmatpush1.bf16.msra.mxu0 %v345
    %494 = vmatprep.subr.bf16.mxu0 %v344
    %495 = vmatpush1.bf16.msra.mxu0 %v343
    %496 = vmatprep.subr.bf16.mxu0 %v374
    %497 = vmatpush2.bf16.msra.mxu0 %v373
    %498 = vmatprep.subr.bf16.mxu0 %v372
    %499 = vmatpush2.bf16.msra.mxu0 %v371
    %500 = vmatprep.subr.bf16.mxu0 %v370
    %501 = vmatpush2.bf16.msra.mxu0 %v369
    %502 = vmatprep.subr.bf16.mxu0 %v368
    %503 = vmatpush2.bf16.msra.mxu0 %v367
    %504 = vmatprep.subr.bf16.mxu0 %v366
    %505 = vmatpush2.bf16.msra.mxu0 %v365
    %506 = vmatprep.subr.bf16.mxu0 %v364
    %507 = vmatpush2.bf16.msra.mxu0 %v363
    %508 = vmatprep.subr.bf16.mxu0 %v362
    %509 = vmatpush2.bf16.msra.mxu0 %v361
    %510 = vmatprep.subr.bf16.mxu0 %v360
    %511 = vmatpush2.bf16.msra.mxu0 %v359
    %512 = vmatprep.mubr.bf16.mxu0 %v42
    %513 = vmatmul.mubr.bf16.gmra.mxu0 %v41
    %v514 = vpop.f32.mrf.mxu0
    %v515 = vadd.f32 %v474, %v514
    %v516 = vpop.f32.mrf.mxu0
    %v517 = vadd.f32 %v476, %v516
    %v518 = vpop.f32.mrf.mxu0
    %v519 = vpop.f32.mrf.mxu0
    %520 = vdwg.mxu0
    %v521 = vmax.f32 %v515, 0.0
    %v522 = vmax.f32 %v517, 0.0
    %v523 = vpack.c.bf16 %v521, %v521
    %v524 = vpack.c.bf16 %v522, %v522
    %v525 = vld [vmem:[%s3] sm:$0xf]
    %v526 = vld [vmem:[%s3 + $0x4] sm:$0xf]
    %v527 = vld [vmem:[%s3 + $0x8] sm:$0xf]
    %v528 = vld [vmem:[%s3 + $0xc] sm:$0xf]
    %v529 = vld [vmem:[%s3 + $0x10] sm:$0xf]
    %v530 = vld [vmem:[%s3 + $0x14] sm:$0xf]
    %v531 = vld [vmem:[%s3 + $0x18] sm:$0xf]
    %v532 = vld [vmem:[%s3 + $0x1c] sm:$0xf]
    %v533 = vld [vmem:[%s3 + $0x20] sm:$0xf]
    %v534 = vld [vmem:[%s3 + $0x24] sm:$0xf]
    %v535 = vld [vmem:[%s3 + $0x28] sm:$0xf]
    %v536 = vld [vmem:[%s3 + $0x2c] sm:$0xf]
    %v537 = vld [vmem:[%s3 + $0x30] sm:$0xf]
    %v538 = vld [vmem:[%s3 + $0x34] sm:$0xf]
    %v539 = vld [vmem:[%s3 + $0x38] sm:$0xf]
    %v540 = vld [vmem:[%s3 + $0x3c] sm:$0xf]
    %v541 = vld [vmem:[%s3 + $0x40] sm:$0xf]
    %v542 = vld [vmem:[%s3 + $0x44] sm:$0xf]
    %v543 = vld [vmem:[%s3 + $0x48] sm:$0xf]
    %v544 = vld [vmem:[%s3 + $0x4c] sm:$0xf]
    %v545 = vld [vmem:[%s3 + $0x50] sm:$0xf]
    %v546 = vld [vmem:[%s3 + $0x54] sm:$0xf]
    %v547 = vld [vmem:[%s3 + $0x58] sm:$0xf]
    %v548 = vld [vmem:[%s3 + $0x5c] sm:$0xf]
    %v549 = vld [vmem:[%s3 + $0x60] sm:$0xf]
    %v550 = vld [vmem:[%s3 + $0x64] sm:$0xf]
    %v551 = vld [vmem:[%s3 + $0x68] sm:$0xf]
    %v552 = vld [vmem:[%s3 + $0x6c] sm:$0xf]
    %v553 = vld [vmem:[%s3 + $0x70] sm:$0xf]
    %v554 = vld [vmem:[%s3 + $0x74] sm:$0xf]
    %v555 = vld [vmem:[%s3 + $0x78] sm:$0xf]
    %v556 = vld [vmem:[%s3 + $0x7c] sm:$0xf]
    %v557 = vld [vmem:[%s4] sm:$0x1]
    %v559 = vlaneseq
    %v560 = vshrl.u32 %v559, 7
    %v561 = vsub.s32 0, %v560
    %v562 = vrot.slane %v557, %v561
    %v596 = vunpack.c.l.b16 %v525
    %v597 = vunpack.c.l.b16 %v526
    %v598 = vunpack.c.l.b16 %v527
    %v599 = vunpack.c.l.b16 %v528
    %v600 = vunpack.c.l.b16 %v529
    %v601 = vunpack.c.l.b16 %v530
    %v602 = vunpack.c.l.b16 %v531
    %v603 = vunpack.c.l.b16 %v532
    %v604 = vunpack.c.l.b16 %v533
    %v605 = vunpack.c.l.b16 %v534
    %v606 = vunpack.c.l.b16 %v535
    %v607 = vunpack.c.l.b16 %v536
    %v608 = vunpack.c.l.b16 %v537
    %v609 = vunpack.c.l.b16 %v538
    %v610 = vunpack.c.l.b16 %v539
    %v611 = vunpack.c.l.b16 %v540
    %v612 = vunpack.c.l.b16 %v541
    %v613 = vunpack.c.l.b16 %v542
    %v614 = vunpack.c.l.b16 %v543
    %v615 = vunpack.c.l.b16 %v544
    %v616 = vunpack.c.l.b16 %v545
    %v617 = vunpack.c.l.b16 %v546
    %v618 = vunpack.c.l.b16 %v547
    %v619 = vunpack.c.l.b16 %v548
    %v620 = vunpack.c.l.b16 %v549
    %v621 = vunpack.c.l.b16 %v550
    %v622 = vunpack.c.l.b16 %v551
    %v623 = vunpack.c.l.b16 %v552
    %v624 = vunpack.c.l.b16 %v553
    %v625 = vunpack.c.l.b16 %v554
    %v626 = vunpack.c.l.b16 %v555
    %v627 = vunpack.c.l.b16 %v556
    %v628 = vpack.c.b16 %v597, %v596
    %v629 = vpack.c.b16 %v599, %v598
    %v630 = vpack.c.b16 %v601, %v600
    %v631 = vpack.c.b16 %v603, %v602
    %v632 = vpack.c.b16 %v605, %v604
    %v633 = vpack.c.b16 %v607, %v606
    %v634 = vpack.c.b16 %v609, %v608
    %v635 = vpack.c.b16 %v611, %v610
    %v636 = vpack.c.b16 %v613, %v612
    %v637 = vpack.c.b16 %v615, %v614
    %v638 = vpack.c.b16 %v617, %v616
    %v639 = vpack.c.b16 %v619, %v618
    %v640 = vpack.c.b16 %v621, %v620
    %v641 = vpack.c.b16 %v623, %v622
    %v642 = vpack.c.b16 %v625, %v624
    %v643 = vpack.c.b16 %v627, %v626
    %660 = vmatprep.subr.bf16.mxu0 0
    %661 = vmatpush1.bf16.msra.mxu0 %v635
    %662 = vmatprep.subr.bf16.mxu0 0
    %663 = vmatpush1.bf16.msra.mxu0 %v634
    %664 = vmatprep.subr.bf16.mxu0 0
    %665 = vmatpush1.bf16.msra.mxu0 %v633
    %666 = vmatprep.subr.bf16.mxu0 0
    %667 = vmatpush1.bf16.msra.mxu0 %v632
    %668 = vmatprep.subr.bf16.mxu0 0
    %669 = vmatpush1.bf16.msra.mxu0 %v631
    %670 = vmatprep.subr.bf16.mxu0 0
    %671 = vmatpush1.bf16.msra.mxu0 %v630
    %672 = vmatprep.subr.bf16.mxu0 0
    %673 = vmatpush1.bf16.msra.mxu0 %v629
    %674 = vmatprep.subr.bf16.mxu0 0
    %675 = vmatpush1.bf16.msra.mxu0 %v628
    %676 = vmatprep.subr.bf16.mxu0 0
    %677 = vmatpush2.bf16.msra.mxu0 %v643
    %678 = vmatprep.subr.bf16.mxu0 0
    %679 = vmatpush2.bf16.msra.mxu0 %v642
    %680 = vmatprep.subr.bf16.mxu0 0
    %681 = vmatpush2.bf16.msra.mxu0 %v641
    %682 = vmatprep.subr.bf16.mxu0 0
    %683 = vmatpush2.bf16.msra.mxu0 %v640
    %684 = vmatprep.subr.bf16.mxu0 0
    %685 = vmatpush2.bf16.msra.mxu0 %v639
    %686 = vmatprep.subr.bf16.mxu0 0
    %687 = vmatpush2.bf16.msra.mxu0 %v638
    %688 = vmatprep.subr.bf16.mxu0 0
    %689 = vmatpush2.bf16.msra.mxu0 %v637
    %690 = vmatprep.subr.bf16.mxu0 0
    %691 = vmatpush2.bf16.msra.mxu0 %v636
    %692 = vmatprep.mubr.bf16.mxu0 %v524
    %693 = vmatmul.mubr.bf16.gmra.mxu0 %v523
    %v694 = vpop.f32.mrf.mxu0
    %v695 = vadd.f32 %v562, %v694
    %v696 = vpop.f32.mrf.mxu0
    %v697 = vpop.f32.mrf.mxu0
    %v698 = vpop.f32.mrf.mxu0
    %699 = vdwg.mxu0
    %v700 = vxor.u32 %v695, 2147483648
    %v701 = vmul.f32 %v700, 1.442695
    %v702 = vpow.pop %v701
    %v703 = vadd.f32 %v702, 1.0
    %v704 = vrcp.pop %v703
    %v705 = vmul.f32 1.0, %v704
    %706 = vst [vmem:[%s5] sm:$0xff] %v705
    // Predicated region
    $region26: #{_lambda_.1} parent=1 // pred_check
      _
    $region27: #{_lambda_.1} parent=1 // pred_check_branch
      %708 = sbr.rel (0) target = $region29
    $region28: #{_lambda_.1} parent=1 // pred_region
      _
    $region29: #{_lambda_.1} parent=1 // pred_fallthru
      _
    // Predicated region
    $region30: #{_lambda_.1} parent=1 // pred_check
      _
    $region31: #{_lambda_.1} parent=1 // pred_check_branch
      %710 = sbr.rel (0) target = $region33
    $region32: #{_lambda_.1} parent=1 // pred_region
      _
    $region33: #{_lambda_.1} parent=1 // pred_fallthru
      _
    %711 = vsyncpa [#allocation3], 1

</llo_original>
